<compile_context>
chip_gen: v7x
topology: tpu7x:2x2x1
jax: 0.10.0
libtpu: 0.0.40
codegen_flags: <defaults>
</compile_context>

<pallas_src>
import jax
import jax.numpy as jnp
from jax.experimental import pallas as pl
from jax.experimental.pallas import tpu as pltpu


# --------------------------------------------------------------------------- #
# Fused Pallas kernel:  (pool+msg1 fused) -> linear1+ReLU -> msg2 -> linear2+ReLU
# --------------------------------------------------------------------------- #
def _conv_block3_kernel(x_ref, ac_t_ref, app_t_ref, p_ref, o_ref):
    """Channel-major, whole batch at once, node axis lane-dense.

    x_ref     : (B*Cin, Ns)                stacked channel-major input
    ac_t_ref  : (Ns, Nd)                   (A_pp @ A_pool)^T  — fused pooling+msg1
    app_t_ref : (Nd, Nd)                   A_pp^T
    p_ref     : (B*Cout, B*Cin + B*Cout + 2)  packed [W1_bd | W2_bd | b1 | b2]
    o_ref     : (B*Cout, Nd)
    """
    bci = x_ref.shape[0]      # B*Cin  (static)
    bco = o_ref.shape[0]      # B*Cout (static)

    # Static slices of the packed parameter slab (free).
    w1 = p_ref[:, :bci]                       # (B*Cout, B*Cin)
    w2 = p_ref[:, bci:bci + bco]              # (B*Cout, B*Cout)
    b1 = p_ref[:, bci + bco:bci + bco + 1]    # (B*Cout, 1)
    b2 = p_ref[:, bci + bco + 1:bci + bco + 2]

    # fused pooling + msg pass 1:  m1 = (A_pp @ A_pool @ x)^T-channel-major
    m1 = jnp.dot(x_ref[...], ac_t_ref[...], preferred_element_type=jnp.float32)
    # layer1:  y1 = relu(W1 @ m1 + b1)
    y1 = jnp.maximum(
        jnp.dot(w1, m1, preferred_element_type=jnp.float32) + b1, 0.0)
    # msg pass 2:  m2 = (A_pp @ y1)
    m2 = jnp.dot(y1, app_t_ref[...], preferred_element_type=jnp.float32)
    # layer2:  y2 = relu(W2 @ m2 + b2)
    y2 = jnp.maximum(
        jnp.dot(w2, m2, preferred_element_type=jnp.float32) + b2, 0.0)
    o_ref[...] = y2


# --------------------------------------------------------------------------- #
# One-time constant prep (pure function of parameters / graph structure).
# Call ONCE at model init; the results are reused on every forward call.
# --------------------------------------------------------------------------- #
def init_conv_block3_consts(A_pool, A_pp, W1, b1, W2, b2, batch):
    """A_pool: (Nd, Ns), A_pp: (Nd, Nd), W: (Cin, Cout)-style Linear weights."""
    A_c = jnp.dot(A_pp, A_pool)                          # (Nd, Ns) fused adjacency
    ac_t = jnp.asarray(A_c.T, jnp.float32)               # (Ns, Nd)
    app_t = jnp.asarray(A_pp.T, jnp.float32)             # (Nd, Nd)

    eye_b = jnp.eye(batch, dtype=jnp.float32)
    w1_bd = jnp.kron(eye_b, W1.T)                        # (B*Cout, B*Cin)
    w2_bd = jnp.kron(eye_b, W2.T)                        # (B*Cout, B*Cout)
    b1_col = jnp.tile(b1.reshape(-1, 1), (batch, 1))     # (B*Cout, 1)
    b2_col = jnp.tile(b2.reshape(-1, 1), (batch, 1))     # (B*Cout, 1)

    params = jnp.concatenate([w1_bd, w2_bd, b1_col, b2_col], axis=1)
    return ac_t, app_t, params


# --------------------------------------------------------------------------- #
# Per-call wrapper: channel-major in, channel-major out.  Single pallas_call,
# zero extra XLA ops in the call path.
# --------------------------------------------------------------------------- #
def conv_block3_cm(x_cm, ac_t, app_t, params):
    """x_cm: (B*Cin, Ns) -> (B*Cout, Nd), channel-major both sides."""
    bci, ns = x_cm.shape
    nd = ac_t.shape[1]
    bco = params.shape[0]

    flops = 2 * (bci * ns * nd + bco * bci * nd + bco * nd * nd + bco * bco * nd)
    bytes_accessed = 4 * (x_cm.size + ac_t.size + app_t.size + params.size + bco * nd)
    cost = pl.CostEstimate(flops=flops, transcendentals=0,
                           bytes_accessed=bytes_accessed)

    vmem = pl.BlockSpec(memory_space=pltpu.MemorySpace.VMEM)
    return pl.pallas_call(
        _conv_block3_kernel,
        out_shape=jax.ShapeDtypeStruct((bco, nd), jnp.float32),
        in_specs=[vmem] * 4,
        out_specs=vmem,
        cost_estimate=cost,
    )(x_cm, ac_t, app_t, params)


# --------------------------------------------------------------------------- #
# Boundary layout helpers — use ONLY at the model edge (not per block).
# --------------------------------------------------------------------------- #
def to_channel_major(x):
    """(B, N, C) -> (B*C, N)."""
    B, N, C = x.shape
    return jnp.transpose(x, (0, 2, 1)).reshape(B * C, N)


def from_channel_major(x_cm, batch):
    """(B*C, N) -> (B, N, C)."""
    BC, N = x_cm.shape
    C = BC // batch
    return jnp.transpose(x_cm.reshape(batch, C, N), (0, 2, 1))


# --------------------------------------------------------------------------- #
# Pure-JAX reference (same math, node-major, UNfused pooling) for correctness
# --------------------------------------------------------------------------- #
def conv_block3_reference(x, A_pool, A_pp, W1, b1, W2, b2):
    h = jnp.einsum('ds,bsc->bdc', A_pool, x)
    y1 = jnp.maximum(jnp.einsum('de,bec->bdc', A_pp, h) @ W1 + b1, 0.0)
    y2 = jnp.maximum(jnp.einsum('de,bec->bdc', A_pp, y1) @ W2 + b2, 0.0)
    return y2


# --------------------------------------------------------------------------- #
# Deterministic parameter / graph construction
# --------------------------------------------------------------------------- #
def _dense_linear(key, cin, cout):
    kw, kb = jax.random.split(key)
    scale = 1.0 / jnp.sqrt(jnp.float32(cin))
    W = jax.random.uniform(kw, (cin, cout), jnp.float32, -scale, scale)
    b = jax.random.uniform(kb, (cout,), jnp.float32, -scale, scale)
    return W, b


def _adj(key, n_dst, n_src, density=0.25):
    kv, km = jax.random.split(key)
    vals = jax.random.normal(kv, (n_dst, n_src), jnp.float32)
    mask = (jax.random.uniform(km, (n_dst, n_src)) < density).astype(jnp.float32)
    A = vals * mask
    deg = jnp.maximum(jnp.sum(mask, axis=1, keepdims=True), 1.0)
    return A / deg


# --------------------------------------------------------------------------- #
if __name__ == "__main__":
    B = 2
    in_channels, out_channels = 6, 6
    Ns = 256   # nodes before pooling (source level)
    Nd = 128   # nodes after pooling  (pointPoint level)

    key = jax.random.PRNGKey(0)
    k1, k2, k3, k4, kx = jax.random.split(key, 5)

    W1, b1 = _dense_linear(k1, in_channels, out_channels)
    W2, b2 = _dense_linear(k2, out_channels, out_channels)
    A_pool = _adj(k3, Nd, Ns)    # pooling adjacency (edge_attr folded in)
    A_pp = _adj(k4, Nd, Nd)      # pointPoint adjacency

    x = jax.random.normal(kx, (B, Ns, in_channels), jnp.float32)

    # ----- one-time init (outside the per-call path) -----
    ac_t, app_t, params = jax.block_until_ready(
        init_conv_block3_consts(A_pool, A_pp, W1, b1, W2, b2, B))

    # ----- per-call path: single fused Pallas kernel, channel-major I/O -----
    x_cm = to_channel_major(x)                  # model-boundary conversion
    run = jax.jit(conv_block3_cm)
    out_cm = jax.block_until_ready(run(x_cm, ac_t, app_t, params))
    out = from_channel_major(out_cm, B)         # model-boundary conversion

    # ----- correctness check against unfused node-major reference -----
    ref = conv_block3_reference(x, A_pool, A_pp, W1, b1, W2, b2)

    assert out.shape == (B, Nd, out_channels), out.shape
    assert bool(jnp.all(jnp.isfinite(out)))
    assert bool(jnp.allclose(out, ref, rtol=1e-3, atol=1e-3))
    print("KERNEL_OK")
</pallas_src>

<mosaic_0001>
module attributes {stable_mosaic.version = 11 : i64} {
  func.func @_conv_block3_kernel(%arg0: memref<12x256xf32, #tpu.memory_space<vmem>>, %arg1: memref<256x128xf32, #tpu.memory_space<vmem>>, %arg2: memref<128x128xf32, #tpu.memory_space<vmem>>, %arg3: memref<12x26xf32, #tpu.memory_space<vmem>>, %arg4: memref<12x128xf32, #tpu.memory_space<vmem>>) attributes {dimension_semantics = [], scalar_prefetch = 0 : i64, scratch_operands = 0 : i64, tpu.core_type = #tpu.core_type<tc>} {
    %c0 = arith.constant 0 : index
    %c0_0 = arith.constant 0 : index
    %0 = vector.load %arg3[%c0, %c0_0] : memref<12x26xf32, #tpu.memory_space<vmem>>, vector<12x12xf32>
    %c0_1 = arith.constant 0 : index
    %c12 = arith.constant 12 : index
    %1 = vector.load %arg3[%c0_1, %c12] : memref<12x26xf32, #tpu.memory_space<vmem>>, vector<12x12xf32>
    %c0_2 = arith.constant 0 : index
    %c24 = arith.constant 24 : index
    %2 = vector.load %arg3[%c0_2, %c24] : memref<12x26xf32, #tpu.memory_space<vmem>>, vector<12x1xf32>
    %c0_3 = arith.constant 0 : index
    %c25 = arith.constant 25 : index
    %3 = vector.load %arg3[%c0_3, %c25] : memref<12x26xf32, #tpu.memory_space<vmem>>, vector<12x1xf32>
    %c0_4 = arith.constant 0 : index
    %c0_5 = arith.constant 0 : index
    %4 = vector.load %arg0[%c0_4, %c0_5] : memref<12x256xf32, #tpu.memory_space<vmem>>, vector<12x256xf32>
    %c0_6 = arith.constant 0 : index
    %c0_7 = arith.constant 0 : index
    %5 = vector.load %arg1[%c0_6, %c0_7] : memref<256x128xf32, #tpu.memory_space<vmem>>, vector<256x128xf32>
    %cst = arith.constant dense<0.000000e+00> : vector<12x128xf32>
    %6 = tpu.matmul %4, %5, %cst {dimension_numbers = #tpu.dot_dimension_numbers<[1], [0], [0], [1], [0, 0, 1, 1], [], []>} : vector<12x256xf32>, vector<256x128xf32>, vector<12x128xf32> -> vector<12x128xf32>
    %cst_8 = arith.constant dense<0.000000e+00> : vector<12x128xf32>
    %7 = tpu.matmul %0, %6, %cst_8 {dimension_numbers = #tpu.dot_dimension_numbers<[1], [0], [0], [1], [0, 0, 1, 1], [], []>} : vector<12x12xf32>, vector<12x128xf32>, vector<12x128xf32> -> vector<12x128xf32>
    %8 = vector.broadcast %2 : vector<12x1xf32> to vector<12x128xf32>
    %9 = arith.addf %7, %8 : vector<12x128xf32>
    %cst_9 = arith.constant 0.000000e+00 : f32
    %10 = vector.broadcast %cst_9 : f32 to vector<12x128xf32>
    %11 = arith.maximumf %9, %10 : vector<12x128xf32>
    %c0_10 = arith.constant 0 : index
    %c0_11 = arith.constant 0 : index
    %12 = vector.load %arg2[%c0_10, %c0_11] : memref<128x128xf32, #tpu.memory_space<vmem>>, vector<128x128xf32>
    %cst_12 = arith.constant dense<0.000000e+00> : vector<12x128xf32>
    %13 = tpu.matmul %11, %12, %cst_12 {dimension_numbers = #tpu.dot_dimension_numbers<[1], [0], [0], [1], [0, 0, 1, 1], [], []>} : vector<12x128xf32>, vector<128x128xf32>, vector<12x128xf32> -> vector<12x128xf32>
    %cst_13 = arith.constant dense<0.000000e+00> : vector<12x128xf32>
    %14 = tpu.matmul %1, %13, %cst_13 {dimension_numbers = #tpu.dot_dimension_numbers<[1], [0], [0], [1], [0, 0, 1, 1], [], []>} : vector<12x12xf32>, vector<12x128xf32>, vector<12x128xf32> -> vector<12x128xf32>
    %15 = vector.broadcast %3 : vector<12x1xf32> to vector<12x128xf32>
    %16 = arith.addf %14, %15 : vector<12x128xf32>
    %cst_14 = arith.constant 0.000000e+00 : f32
    %17 = vector.broadcast %cst_14 : f32 to vector<12x128xf32>
    %18 = arith.maximumf %16, %17 : vector<12x128xf32>
    %c0_15 = arith.constant 0 : index
    %c0_16 = arith.constant 0 : index
    %19 = vector.load %arg4[%c0_15, %c0_16] : memref<12x128xf32, #tpu.memory_space<vmem>>, vector<12x128xf32>
    tpu.vector_store %arg4[%c0_15, %c0_16], %18 {strides = array<i32>} : memref<12x128xf32, #tpu.memory_space<vmem>>, vector<12x128xf32>,
    return
  }
}

</mosaic_0001>

<llo_original>
// kernel: conv_block3_cm.1
$region0: #{conv_block3_cm.1}
  #allocation0 [shape = 'u32[]', space=smem, size = 0x4, offset = 0x4, fixed_abs, tag = 'smem constant byte address 0x4 - core index']
  #allocation1 [shape = 'u32[144,128]{1,0:T(1,128)}', space=vmem, size = 0x12000, scoped, tag = 'internal scratch']
  %s0 = inlined_call_operand.hbm [shape: f32[12,256], index: 0, kind: input, shape index: {}]
  %s1 = inlined_call_operand.hbm [shape: f32[256,128], index: 1, kind: input, shape index: {}]
  %s2 = inlined_call_operand.hbm [shape: f32[128,128], index: 2, kind: input, shape index: {}]
  %s3 = inlined_call_operand.hbm [shape: f32[12,26], index: 3, kind: input, shape index: {}]
  %s4 = inlined_call_operand.hbm [shape: f32[12,128], index: 4, kind: output, shape index: {}]
  %s5 = sld [smem:[#allocation0]]
  $region42: #{conv_block3_cm.1} parent=0
    _
  %s7 = ssub.s32 1, %s5
  %s8 = scalar_select 0, %s7, %s5
  $region1: #{conv_block3_cm.1} parent=0
    #allocation2 [shape = 'u8[16384]{0}', space=vmem, size = 0x4000, scoped, tag = 'input window, operand 0, single buffered']
    #allocation3 [shape = 's32[1]{0}', space=sflag, size = 0x4, scoped, tag = 'scoped memory for conv_block3_cm.1']
    #allocation4 [shape = 's32[1]{0}', space=sflag, size = 0x4, scoped, tag = 'scoped memory for conv_block3_cm.1']
    #allocation5 [shape = 'u8[131072]{0}', space=vmem, size = 0x20000, scoped, tag = 'input window, operand 1, single buffered']
    #allocation6 [shape = 's32[1]{0}', space=sflag, size = 0x4, scoped, tag = 'scoped memory for conv_block3_cm.1']
    #allocation7 [shape = 'u8[65536]{0}', space=vmem, size = 0x10000, scoped, tag = 'input window, operand 2, single buffered']
    #allocation8 [shape = 'u8[8192]{0}', space=vmem, size = 0x2000, scoped, tag = 'input window, operand 3, single buffered']
    #allocation9 [shape = 's32[1]{0}', space=sflag, size = 0x4, scoped, tag = 'scoped memory for conv_block3_cm.1']
    #allocation10 [shape = 'u8[8192]{0}', space=vmem, size = 0x2000, scoped, tag = 'output window, operand 0, single buffered']
    %9 = vsyncpa [#allocation3], 0
    %10 = vsyncpa [#allocation6], 0
    %11 = vsyncpa [#allocation9], 0
    %12 = vsyncpa [#allocation4], 0
    // Predicated region
    $region2: #{conv_block3_cm.1} parent=1 // pred_check
      _
    $region3: #{conv_block3_cm.1} parent=1 // pred_check_branch
      %14 = sbr.rel (0) target = $region5
    $region4: #{conv_block3_cm.1} parent=1 // pred_region
      %s16 = ssub.s32 512, 512
      %17 = vsyncadd [#allocation3], %s16
      %s18 = sshll.u32 [#allocation2], 4
      %s19 = int_to_ptr.vmem [resolvable:$true] %s18
      %24 = dma.hbm_to_vmem [thread:$0]  %s0, 512, %s19, [#allocation3], 256, 256, 16
    $region5: #{conv_block3_cm.1} parent=1 // pred_fallthru
      _
    // Predicated region
    $region6: #{conv_block3_cm.1} parent=1 // pred_check
      _
    $region7: #{conv_block3_cm.1} parent=1 // pred_check_branch
      %26 = sbr.rel (0) target = $region9
    $region8: #{conv_block3_cm.1} parent=1 // pred_region
      %s28 = ssub.s32 4096, 4096
      %29 = vsyncadd [#allocation6], %s28
      %s30 = sshll.u32 [#allocation5], 4
      %s31 = int_to_ptr.vmem [resolvable:$true] %s30
      %36 = dma.hbm_to_vmem [thread:$0]  %s1, 4096, %s31, [#allocation6], 128, 128, 8
    $region9: #{conv_block3_cm.1} parent=1 // pred_fallthru
      _
    // Predicated region
    $region10: #{conv_block3_cm.1} parent=1 // pred_check
      _
    $region11: #{conv_block3_cm.1} parent=1 // pred_check_branch
      %38 = sbr.rel (0) target = $region13
    $region12: #{conv_block3_cm.1} parent=1 // pred_region
      %s40 = ssub.s32 2048, 2048
      %41 = vsyncadd [#allocation6], %s40
      %s42 = sshll.u32 [#allocation7], 4
      %s43 = int_to_ptr.vmem [resolvable:$true] %s42
      %48 = dma.hbm_to_vmem [thread:$0]  %s2, 2048, %s43, [#allocation6], 128, 128, 8
    $region13: #{conv_block3_cm.1} parent=1 // pred_fallthru
      _
    // Predicated region
    $region14: #{conv_block3_cm.1} parent=1 // pred_check
      _
    $region15: #{conv_block3_cm.1} parent=1 // pred_check_branch
      %50 = sbr.rel (0) target = $region17
    $region16: #{conv_block3_cm.1} parent=1 // pred_region
      %s52 = ssub.s32 256, 256
      %53 = vsyncadd [#allocation9], %s52
      %s54 = sshll.u32 [#allocation8], 4
      %s55 = int_to_ptr.vmem [resolvable:$true] %s54
      %60 = dma.hbm_to_vmem [thread:$0]  %s3, 256, %s55, [#allocation9], 128, 128, 8
    $region17: #{conv_block3_cm.1} parent=1 // pred_fallthru
      _
    // Predicated region
    $region18: #{conv_block3_cm.1} parent=1 // pred_check
      _
    $region19: #{conv_block3_cm.1} parent=1 // pred_check_branch
      %62 = sbr.rel (0) target = $region21
    $region20: #{conv_block3_cm.1} parent=1 // pred_region
      %63 = dma.done [#allocation3], 512
    $region21: #{conv_block3_cm.1} parent=1 // pred_fallthru
      _
    // Predicated region
    $region22: #{conv_block3_cm.1} parent=1 // pred_check
      _
    $region23: #{conv_block3_cm.1} parent=1 // pred_check_branch
      %65 = sbr.rel (0) target = $region25
    $region24: #{conv_block3_cm.1} parent=1 // pred_region
      %66 = dma.done [#allocation6], 4096
    $region25: #{conv_block3_cm.1} parent=1 // pred_fallthru
      _
    // Predicated region
    $region26: #{conv_block3_cm.1} parent=1 // pred_check
      _
    $region27: #{conv_block3_cm.1} parent=1 // pred_check_branch
      %68 = sbr.rel (0) target = $region29
    $region28: #{conv_block3_cm.1} parent=1 // pred_region
      %69 = dma.done [#allocation6], 2048
    $region29: #{conv_block3_cm.1} parent=1 // pred_fallthru
      _
    // Predicated region
    $region30: #{conv_block3_cm.1} parent=1 // pred_check
      _
    $region31: #{conv_block3_cm.1} parent=1 // pred_check_branch
      %71 = sbr.rel (0) target = $region33
    $region32: #{conv_block3_cm.1} parent=1 // pred_region
      %72 = dma.done [#allocation9], 256
    $region33: #{conv_block3_cm.1} parent=1 // pred_fallthru
      _
    %v73 = vld [vmem:[#allocation8] sm:$0xff]
    %v74 = vld [vmem:[#allocation8 + $0x8] sm:$0xf]
    %v75 = vld [vmem:[#allocation2] sm:$0xff]
    %v76 = vld [vmem:[#allocation2 + $0x8] sm:$0xff]
    %v77 = vld [vmem:[#allocation2 + $0x10] sm:$0xf]
    %v78 = vld [vmem:[#allocation2 + $0x18] sm:$0xf]
    %v79 = vld [vmem:[#allocation5] sm:$0xff]
    %v80 = vld [vmem:[#allocation5 + $0x8] sm:$0xff]
    %v81 = vld [vmem:[#allocation5 + $0x10] sm:$0xff]
    %v82 = vld [vmem:[#allocation5 + $0x18] sm:$0xff]
    %v83 = vld [vmem:[#allocation5 + $0x20] sm:$0xff]
    %v84 = vld [vmem:[#allocation5 + $0x28] sm:$0xff]
    %v85 = vld [vmem:[#allocation5 + $0x30] sm:$0xff]
    %v86 = vld [vmem:[#allocation5 + $0x38] sm:$0xff]
    %v87 = vld [vmem:[#allocation5 + $0x40] sm:$0xff]
    %v88 = vld [vmem:[#allocation5 + $0x48] sm:$0xff]
    %v89 = vld [vmem:[#allocation5 + $0x50] sm:$0xff]
    %v90 = vld [vmem:[#allocation5 + $0x58] sm:$0xff]
    %v91 = vld [vmem:[#allocation5 + $0x60] sm:$0xff]
    %v92 = vld [vmem:[#allocation5 + $0x68] sm:$0xff]
    %v93 = vld [vmem:[#allocation5 + $0x70] sm:$0xff]
    %v94 = vld [vmem:[#allocation5 + $0x78] sm:$0xff]
    %v95 = vld [vmem:[#allocation5 + $0x80] sm:$0xff]
    %v96 = vld [vmem:[#allocation5 + $0x88] sm:$0xff]
    %v97 = vld [vmem:[#allocation5 + $0x90] sm:$0xff]
    %v98 = vld [vmem:[#allocation5 + $0x98] sm:$0xff]
    %v99 = vld [vmem:[#allocation5 + $0xa0] sm:$0xff]
    %v100 = vld [vmem:[#allocation5 + $0xa8] sm:$0xff]
    %v101 = vld [vmem:[#allocation5 + $0xb0] sm:$0xff]
    %v102 = vld [vmem:[#allocation5 + $0xb8] sm:$0xff]
    %v103 = vld [vmem:[#allocation5 + $0xc0] sm:$0xff]
    %v104 = vld [vmem:[#allocation5 + $0xc8] sm:$0xff]
    %v105 = vld [vmem:[#allocation5 + $0xd0] sm:$0xff]
    %v106 = vld [vmem:[#allocation5 + $0xd8] sm:$0xff]
    %v107 = vld [vmem:[#allocation5 + $0xe0] sm:$0xff]
    %v108 = vld [vmem:[#allocation5 + $0xe8] sm:$0xff]
    %v109 = vld [vmem:[#allocation5 + $0xf0] sm:$0xff]
    %v110 = vld [vmem:[#allocation5 + $0xf8] sm:$0xff]
    %111 = vmatprep.subr.mxu0 0.0
    %112 = vmatpush1.msra.mxu0 %v79
    %113 = vmatprep.subr.mxu0 0.0
    %114 = vmatpush1.msra.mxu0 %v80
    %115 = vmatprep.subr.mxu0 0.0
    %116 = vmatpush1.msra.mxu0 %v81
    %117 = vmatprep.subr.mxu0 0.0
    %118 = vmatpush1.msra.mxu0 %v82
    %119 = vmatprep.subr.mxu0 0.0
    %120 = vmatpush1.msra.mxu0 %v83
    %121 = vmatprep.subr.mxu0 0.0
    %122 = vmatpush1.msra.mxu0 %v84
    %123 = vmatprep.subr.mxu0 0.0
    %124 = vmatpush1.msra.mxu0 %v85
    %125 = vmatprep.subr.mxu0 0.0
    %126 = vmatpush1.msra.mxu0 %v86
    %127 = vmatprep.subr.mxu0 0.0
    %128 = vmatpush1.msra.mxu0 %v87
    %129 = vmatprep.subr.mxu0 0.0
    %130 = vmatpush1.msra.mxu0 %v88
    %131 = vmatprep.subr.mxu0 0.0
    %132 = vmatpush1.msra.mxu0 %v89
    %133 = vmatprep.subr.mxu0 0.0
    %134 = vmatpush1.msra.mxu0 %v90
    %135 = vmatprep.subr.mxu0 0.0
    %136 = vmatpush1.msra.mxu0 %v91
    %137 = vmatprep.subr.mxu0 0.0
    %138 = vmatpush1.msra.mxu0 %v92
    %139 = vmatprep.subr.mxu0 0.0
    %140 = vmatpush1.msra.mxu0 %v93
    %141 = vmatprep.subr.mxu0 0.0
    %142 = vmatpush1.msra.mxu0 %v94
    %143 = vmatprep.subr.mxu0 0.0
    %144 = vmatpush1.msra.mxu0 %v95
    %145 = vmatprep.subr.mxu0 0.0
    %146 = vmatpush1.msra.mxu0 %v96
    %147 = vmatprep.subr.mxu0 0.0
    %148 = vmatpush1.msra.mxu0 %v97
    %149 = vmatprep.subr.mxu0 0.0
    %150 = vmatpush1.msra.mxu0 %v98
    %151 = vmatprep.subr.mxu0 0.0
    %152 = vmatpush1.msra.mxu0 %v99
    %153 = vmatprep.subr.mxu0 0.0
    %154 = vmatpush1.msra.mxu0 %v100
    %155 = vmatprep.subr.mxu0 0.0
    %156 = vmatpush1.msra.mxu0 %v101
    %157 = vmatprep.subr.mxu0 0.0
    %158 = vmatpush1.msra.mxu0 %v102
    %159 = vmatprep.subr.mxu0 0.0
    %160 = vmatpush1.msra.mxu0 %v103
    %161 = vmatprep.subr.mxu0 0.0
    %162 = vmatpush1.msra.mxu0 %v104
    %163 = vmatprep.subr.mxu0 0.0
    %164 = vmatpush1.msra.mxu0 %v105
    %165 = vmatprep.subr.mxu0 0.0
    %166 = vmatpush1.msra.mxu0 %v106
    %167 = vmatprep.subr.mxu0 0.0
    %168 = vmatpush1.msra.mxu0 %v107
    %169 = vmatprep.subr.mxu0 0.0
    %170 = vmatpush1.msra.mxu0 %v108
    %171 = vmatprep.subr.mxu0 0.0
    %172 = vmatpush1.msra.mxu0 %v109
    %173 = vmatprep.subr.mxu0 0.0
    %174 = vmatpush1.msra.mxu0 %v110
    %175 = vmatprep.mubr.f32.mxu0 %v76
    %176 = vmatmul.mubr.f32.gmra.mrb[0].mxu0 %v75
    %v177 = vpop.f32.mrb[0].mxu0
    %v178 = vadd.f32 0.0, %v177
    %v179 = vpop.f32.mrb[0].mxu0
    %180 = vmatprep.mubr.f32.mxu0 %v78
    %181 = vmatmul.mubr.f32.gmra.mrb[0].mxu0 %v77
    %v182 = vpop.f32.mrb[0].mxu0
    %v183 = vadd.f32 0.0, %v182
    %v184 = vpop.f32.mrb[0].mxu0
    %185 = vdwg.mxu0
    %187 = vset.pattern.permute.xlu0 24
    %188 = vperm.xlu0 %187, %v73
    %v189 = vpop.permute.xlu0 %188
    %192 = vset.pattern.permute.xlu0 24
    %193 = vperm.xlu0 %192, %v74
    %v194 = vpop.permute.xlu0 %193
    %vm196 = vcmask 97280
    %v197 = vsel %vm196, %v73, 0
    %v199 = vsel %vm196, %v74, 0
    %vm201 = vcmask 1043456
    %v203 = vsel %vm201, %v183, 0
    %205 = vmatprep.subr.mxu0 0.0
    %206 = vmatpush1.msra.mxu0 %v178
    %207 = vmatprep.subr.mxu0 0.0
    %208 = vmatpush1.msra.mxu0 %v203
    %209 = vmatprep.subr.mxu0 0.0
    %210 = vmatpush1.msra.mxu0 0.0
    %211 = vmatprep.subr.mxu0 0.0
    %212 = vmatpush1.msra.mxu0 0.0
    %213 = vmatprep.subr.mxu0 0.0
    %214 = vmatpush1.msra.mxu0 0.0
    %215 = vmatprep.subr.mxu0 0.0
    %216 = vmatpush1.msra.mxu0 0.0
    %217 = vmatprep.subr.mxu0 0.0
    %218 = vmatpush1.msra.mxu0 0.0
    %219 = vmatprep.subr.mxu0 0.0
    %220 = vmatpush1.msra.mxu0 0.0
    %221 = vmatprep.subr.mxu0 0.0
    %222 = vmatpush1.msra.mxu0 0.0
    %223 = vmatprep.subr.mxu0 0.0
    %224 = vmatpush1.msra.mxu0 0.0
    %225 = vmatprep.subr.mxu0 0.0
    %226 = vmatpush1.msra.mxu0 0.0
    %227 = vmatprep.subr.mxu0 0.0
    %228 = vmatpush1.msra.mxu0 0.0
    %229 = vmatprep.subr.mxu0 0.0
    %230 = vmatpush1.msra.mxu0 0.0
    %231 = vmatprep.subr.mxu0 0.0
    %232 = vmatpush1.msra.mxu0 0.0
    %233 = vmatprep.subr.mxu0 0.0
    %234 = vmatpush1.msra.mxu0 0.0
    %235 = vmatprep.subr.mxu0 0.0
    %236 = vmatpush1.msra.mxu0 0.0
    %237 = vmatprep.subr.mxu0 0.0
    %238 = vmatpush1.msra.mxu0 0.0
    %239 = vmatprep.subr.mxu0 0.0
    %240 = vmatpush1.msra.mxu0 0.0
    %241 = vmatprep.subr.mxu0 0.0
    %242 = vmatpush1.msra.mxu0 0.0
    %243 = vmatprep.subr.mxu0 0.0
    %244 = vmatpush1.msra.mxu0 0.0
    %245 = vmatprep.subr.mxu0 0.0
    %246 = vmatpush1.msra.mxu0 0.0
    %247 = vmatprep.subr.mxu0 0.0
    %248 = vmatpush1.msra.mxu0 0.0
    %249 = vmatprep.subr.mxu0 0.0
    %250 = vmatpush1.msra.mxu0 0.0
    %251 = vmatprep.subr.mxu0 0.0
    %252 = vmatpush1.msra.mxu0 0.0
    %253 = vmatprep.subr.mxu0 0.0
    %254 = vmatpush1.msra.mxu0 0.0
    %255 = vmatprep.subr.mxu0 0.0
    %256 = vmatpush1.msra.mxu0 0.0
    %257 = vmatprep.subr.mxu0 0.0
    %258 = vmatpush1.msra.mxu0 0.0
    %259 = vmatprep.subr.mxu0 0.0
    %260 = vmatpush1.msra.mxu0 0.0
    %261 = vmatprep.subr.mxu0 0.0
    %262 = vmatpush1.msra.mxu0 0.0
    %263 = vmatprep.subr.mxu0 0.0
    %264 = vmatpush1.msra.mxu0 0.0
    %265 = vmatprep.subr.mxu0 0.0
    %266 = vmatpush1.msra.mxu0 0.0
    %267 = vmatprep.subr.mxu0 0.0
    %268 = vmatpush1.msra.mxu0 0.0
    %269 = vmatprep.mubr.f32.mxu0 0.0
    %270 = vmatmul.mubr.f32.gmra.mrb[0].mxu0 %v197
    %v271 = vpop.f32.mrb[0].mxu0
    %v272 = vadd.f32 %v189, %v271
    %v273 = vpop.f32.mrb[0].mxu0
    %274 = vmatprep.mubr.f32.mxu0 0.0
    %275 = vmatmul.mubr.f32.gmra.mrb[0].mxu0 %v199
    %v276 = vpop.f32.mrb[0].mxu0
    %v277 = vadd.f32 %v194, %v276
    %v278 = vpop.f32.mrb[0].mxu0
    %279 = vdwg.mxu0
    %v280 = vmax.f32 %v272, 0.0
    %v281 = vmax.f32 %v277, 0.0
    %v282 = vld [vmem:[#allocation7] sm:$0xff]
    %v283 = vld [vmem:[#allocation7 + $0x8] sm:$0xff]
    %v284 = vld [vmem:[#allocation7 + $0x10] sm:$0xff]
    %v285 = vld [vmem:[#allocation7 + $0x18] sm:$0xff]
    %v286 = vld [vmem:[#allocation7 + $0x20] sm:$0xff]
    %v287 = vld [vmem:[#allocation7 + $0x28] sm:$0xff]
    %v288 = vld [vmem:[#allocation7 + $0x30] sm:$0xff]
    %v289 = vld [vmem:[#allocation7 + $0x38] sm:$0xff]
    %v290 = vld [vmem:[#allocation7 + $0x40] sm:$0xff]
    %v291 = vld [vmem:[#allocation7 + $0x48] sm:$0xff]
    %v292 = vld [vmem:[#allocation7 + $0x50] sm:$0xff]
    %v293 = vld [vmem:[#allocation7 + $0x58] sm:$0xff]
    %v294 = vld [vmem:[#allocation7 + $0x60] sm:$0xff]
    %v295 = vld [vmem:[#allocation7 + $0x68] sm:$0xff]
    %v296 = vld [vmem:[#allocation7 + $0x70] sm:$0xff]
    %v297 = vld [vmem:[#allocation7 + $0x78] sm:$0xff]
    %298 = vmatprep.subr.mxu0 0.0
    %299 = vmatpush1.msra.mxu0 %v282
    %300 = vmatprep.subr.mxu0 0.0
    %301 = vmatpush1.msra.mxu0 %v283
    %302 = vmatprep.subr.mxu0 0.0
    %303 = vmatpush1.msra.mxu0 %v284
    %304 = vmatprep.subr.mxu0 0.0
    %305 = vmatpush1.msra.mxu0 %v285
    %306 = vmatprep.subr.mxu0 0.0
    %307 = vmatpush1.msra.mxu0 %v286
    %308 = vmatprep.subr.mxu0 0.0
    %309 = vmatpush1.msra.mxu0 %v287
    %310 = vmatprep.subr.mxu0 0.0
    %311 = vmatpush1.msra.mxu0 %v288
    %312 = vmatprep.subr.mxu0 0.0
    %313 = vmatpush1.msra.mxu0 %v289
    %314 = vmatprep.subr.mxu0 0.0
    %315 = vmatpush1.msra.mxu0 %v290
    %316 = vmatprep.subr.mxu0 0.0
    %317 = vmatpush1.msra.mxu0 %v291
    %318 = vmatprep.subr.mxu0 0.0
    %319 = vmatpush1.msra.mxu0 %v292
    %320 = vmatprep.subr.mxu0 0.0
    %321 = vmatpush1.msra.mxu0 %v293
    %322 = vmatprep.subr.mxu0 0.0
    %323 = vmatpush1.msra.mxu0 %v294
    %324 = vmatprep.subr.mxu0 0.0
    %325 = vmatpush1.msra.mxu0 %v295
    %326 = vmatprep.subr.mxu0 0.0
    %327 = vmatpush1.msra.mxu0 %v296
    %328 = vmatprep.subr.mxu0 0.0
    %329 = vmatpush1.msra.mxu0 %v297
    %330 = vmatprep.subr.mxu0 0.0
    %331 = vmatpush1.msra.mxu0 0.0
    %332 = vmatprep.subr.mxu0 0.0
    %333 = vmatpush1.msra.mxu0 0.0
    %334 = vmatprep.subr.mxu0 0.0
    %335 = vmatpush1.msra.mxu0 0.0
    %336 = vmatprep.subr.mxu0 0.0
    %337 = vmatpush1.msra.mxu0 0.0
    %338 = vmatprep.subr.mxu0 0.0
    %339 = vmatpush1.msra.mxu0 0.0
    %340 = vmatprep.subr.mxu0 0.0
    %341 = vmatpush1.msra.mxu0 0.0
    %342 = vmatprep.subr.mxu0 0.0
    %343 = vmatpush1.msra.mxu0 0.0
    %344 = vmatprep.subr.mxu0 0.0
    %345 = vmatpush1.msra.mxu0 0.0
    %346 = vmatprep.subr.mxu0 0.0
    %347 = vmatpush1.msra.mxu0 0.0
    %348 = vmatprep.subr.mxu0 0.0
    %349 = vmatpush1.msra.mxu0 0.0
    %350 = vmatprep.subr.mxu0 0.0
    %351 = vmatpush1.msra.mxu0 0.0
    %352 = vmatprep.subr.mxu0 0.0
    %353 = vmatpush1.msra.mxu0 0.0
    %354 = vmatprep.subr.mxu0 0.0
    %355 = vmatpush1.msra.mxu0 0.0
    %356 = vmatprep.subr.mxu0 0.0
    %357 = vmatpush1.msra.mxu0 0.0
    %358 = vmatprep.subr.mxu0 0.0
    %359 = vmatpush1.msra.mxu0 0.0
    %360 = vmatprep.subr.mxu0 0.0
    %361 = vmatpush1.msra.mxu0 0.0
    %362 = vmatprep.mubr.f32.mxu0 0.0
    %363 = vmatmul.mubr.f32.gmra.mrb[0].mxu0 %v280
    %v364 = vpop.f32.mrb[0].mxu0
    %v365 = vadd.f32 0.0, %v364
    %v366 = vpop.f32.mrb[0].mxu0
    %367 = vmatprep.mubr.f32.mxu0 0.0
    %368 = vmatmul.mubr.f32.gmra.mrb[0].mxu0 %v281
    %v369 = vpop.f32.mrb[0].mxu0
    %v370 = vadd.f32 0.0, %v369
    %v371 = vpop.f32.mrb[0].mxu0
    %372 = vdwg.mxu0
    %373 = vset.pattern.permute.xlu0 25
    %374 = vperm.xlu0 %373, %v73
    %v375 = vpop.permute.xlu0 %374
    %377 = vset.pattern.permute.xlu0 25
    %378 = vperm.xlu0 %377, %v74
    %v379 = vpop.permute.xlu0 %378
    %381 = vrot.lane.b32.xlu0 %v73, 116
    %v382 = vpop.permute.xlu0 %381
    %383 = vrot.lane.b32.xlu0 %v74, 116
    %v384 = vpop.permute.xlu0 %383
    %v385 = vsel %vm196, %v382, 0
    %v387 = vsel %vm196, %v384, 0
    %v390 = vsel %vm201, %v370, 0
    %392 = vmatprep.subr.mxu0 0.0
    %393 = vmatpush1.msra.mxu0 %v365
    %394 = vmatprep.subr.mxu0 0.0
    %395 = vmatpush1.msra.mxu0 %v390
    %396 = vmatprep.subr.mxu0 0.0
    %397 = vmatpush1.msra.mxu0 0.0
    %398 = vmatprep.subr.mxu0 0.0
    %399 = vmatpush1.msra.mxu0 0.0
    %400 = vmatprep.subr.mxu0 0.0
    %401 = vmatpush1.msra.mxu0 0.0
    %402 = vmatprep.subr.mxu0 0.0
    %403 = vmatpush1.msra.mxu0 0.0
    %404 = vmatprep.subr.mxu0 0.0
    %405 = vmatpush1.msra.mxu0 0.0
    %406 = vmatprep.subr.mxu0 0.0
    %407 = vmatpush1.msra.mxu0 0.0
    %408 = vmatprep.subr.mxu0 0.0
    %409 = vmatpush1.msra.mxu0 0.0
    %410 = vmatprep.subr.mxu0 0.0
    %411 = vmatpush1.msra.mxu0 0.0
    %412 = vmatprep.subr.mxu0 0.0
    %413 = vmatpush1.msra.mxu0 0.0
    %414 = vmatprep.subr.mxu0 0.0
    %415 = vmatpush1.msra.mxu0 0.0
    %416 = vmatprep.subr.mxu0 0.0
    %417 = vmatpush1.msra.mxu0 0.0
    %418 = vmatprep.subr.mxu0 0.0
    %419 = vmatpush1.msra.mxu0 0.0
    %420 = vmatprep.subr.mxu0 0.0
    %421 = vmatpush1.msra.mxu0 0.0
    %422 = vmatprep.subr.mxu0 0.0
    %423 = vmatpush1.msra.mxu0 0.0
    %424 = vmatprep.subr.mxu0 0.0
    %425 = vmatpush1.msra.mxu0 0.0
    %426 = vmatprep.subr.mxu0 0.0
    %427 = vmatpush1.msra.mxu0 0.0
    %428 = vmatprep.subr.mxu0 0.0
    %429 = vmatpush1.msra.mxu0 0.0
    %430 = vmatprep.subr.mxu0 0.0
    %431 = vmatpush1.msra.mxu0 0.0
    %432 = vmatprep.subr.mxu0 0.0
    %433 = vmatpush1.msra.mxu0 0.0
    %434 = vmatprep.subr.mxu0 0.0
    %435 = vmatpush1.msra.mxu0 0.0
    %436 = vmatprep.subr.mxu0 0.0
    %437 = vmatpush1.msra.mxu0 0.0
    %438 = vmatprep.subr.mxu0 0.0
    %439 = vmatpush1.msra.mxu0 0.0
    %440 = vmatprep.subr.mxu0 0.0
    %441 = vmatpush1.msra.mxu0 0.0
    %442 = vmatprep.subr.mxu0 0.0
    %443 = vmatpush1.msra.mxu0 0.0
    %444 = vmatprep.subr.mxu0 0.0
    %445 = vmatpush1.msra.mxu0 0.0
    %446 = vmatprep.subr.mxu0 0.0
    %447 = vmatpush1.msra.mxu0 0.0
    %448 = vmatprep.subr.mxu0 0.0
    %449 = vmatpush1.msra.mxu0 0.0
    %450 = vmatprep.subr.mxu0 0.0
    %451 = vmatpush1.msra.mxu0 0.0
    %452 = vmatprep.subr.mxu0 0.0
    %453 = vmatpush1.msra.mxu0 0.0
    %454 = vmatprep.subr.mxu0 0.0
    %455 = vmatpush1.msra.mxu0 0.0
    %456 = vmatprep.mubr.f32.mxu0 0.0
    %457 = vmatmul.mubr.f32.gmra.mrb[0].mxu0 %v385
    %v458 = vpop.f32.mrb[0].mxu0
    %v459 = vadd.f32 %v375, %v458
    %v460 = vpop.f32.mrb[0].mxu0
    %461 = vmatprep.mubr.f32.mxu0 0.0
    %462 = vmatmul.mubr.f32.gmra.mrb[0].mxu0 %v387
    %v463 = vpop.f32.mrb[0].mxu0
    %v464 = vadd.f32 %v379, %v463
    %v465 = vpop.f32.mrb[0].mxu0
    %466 = vdwg.mxu0
    %v467 = vmax.f32 %v459, 0.0
    %v468 = vmax.f32 %v464, 0.0
    %469 = vst [vmem:[#allocation10] sm:$0xff] %v467
    %470 = vst [vmem:[#allocation10 + $0x8] sm:$0xf] %v468
    // Predicated region
    $region34: #{conv_block3_cm.1} parent=1 // pred_check
      _
    $region35: #{conv_block3_cm.1} parent=1 // pred_check_branch
      %472 = sbr.rel (0) target = $region37
    $region36: #{conv_block3_cm.1} parent=1 // pred_region
      %s474 = ssub.s32 256, 256
      %475 = vsyncadd [#allocation4], %s474
      %s476 = sshll.u32 [#allocation10], 4
      %s477 = int_to_ptr.vmem [resolvable:$true] %s476
      %482 = dma.vmem_to_hbm [thread:$0]  %s477, 256, %s4, [#allocation4], 128, 128, 8
    $region37: #{conv_block3_cm.1} parent=1 // pred_fallthru
      _
    // Predicated region
    $region38: #{conv_block3_cm.1} parent=1 // pred_check
      _
    $region39: #{conv_block3_cm.1} parent=1 // pred_check_branch
      %484 = sbr.rel (0) target = $region41
    $region40: #{conv_block3_cm.1} parent=1 // pred_region
      %485 = dma.done [#allocation4], 256
    $region41: #{conv_block3_cm.1} parent=1 // pred_fallthru
      _
    %486 = vsyncpa [#allocation3], 1
    %487 = vsyncpa [#allocation6], 1
    %488 = vsyncpa [#allocation9], 1
    %489 = vsyncpa [#allocation4], 1

</llo_original>
